<compile_context>
chip_gen: v7x
topology: tpu7x:2x2x1
jax: 0.10.0
libtpu: 0.0.40
codegen_flags: <defaults>
</compile_context>

<pallas_src>
import functools

import jax
import jax.numpy as jnp
from jax.experimental import pallas as pl
from jax.experimental.pallas import tpu as pltpu

KSIZE = 7
PAD = 3
THRESHOLD = 0.8
EPS = 1e-5


def _rn_l2_kernel(x_ref, m_ref, mean_ref, std_ref, o_ref, *, hw):
    # x_ref:    VMEM (bt, ct, HW) -- lane-dense spatial layout
    # m_ref:    VMEM (bt, 1, HW)  -- binary foreground mask (0/1)
    # mean_ref: VMEM (bt, ct, 1)  -- style mean (broadcasts on lanes)
    # std_ref:  VMEM (bt, ct, 1)  -- style std
    # o_ref:    VMEM (bt, ct, HW)
    hw_f = float(hw)

    x = x_ref[...].astype(jnp.float32)   # (bt, ct, HW)
    m = m_ref[...].astype(jnp.float32)   # (bt, 1, HW)

    # ---- pass 1: raw sums for the per-channel pivot & foreground size -------
    s_all = jnp.sum(x, axis=-1, keepdims=True)        # (bt, ct, 1)
    n_fg = jnp.sum(m, axis=-1, keepdims=True)         # (bt, 1, 1)
    piv = s_all * (1.0 / hw_f)                        # per-channel pivot

    # ---- pass 2: pivoted sufficient statistics (x resident in VMEM) ---------
    y = x - piv
    ym = y * m
    sy_fg = jnp.sum(ym, axis=-1, keepdims=True)       # (bt, ct, 1)
    qy_fg = jnp.sum(ym * y, axis=-1, keepdims=True)   # m binary -> == sum(y^2*m)
    sy_all = jnp.sum(y, axis=-1, keepdims=True)
    qy_all = jnp.sum(y * y, axis=-1, keepdims=True)

    sy_bg = sy_all - sy_fg
    qy_bg = qy_all - qy_fg
    n_bg = hw_f - n_fg

    # sr == 0 -> 1 guard, exactly as in the PyTorch reference, for BOTH regions.
    sr_fg = jnp.where(n_fg == 0.0, 1.0, n_fg)
    sr_bg = jnp.where(n_bg == 0.0, 1.0, n_bg)

    d_fg = sy_fg / sr_fg           # mu_fg - pivot (tiny (bt,ct,1) divides)
    d_bg = sy_bg / sr_bg
    mu_fg = piv + d_fg             # when n_fg == 0 the fg coefficients are never
    mu_bg = piv + d_bg             # selected (m == 0 everywhere), so value is moot

    # PyTorch quirk preserved: the squared-deviation sum runs over ALL HW
    # positions (outside-region zeros contribute mu^2), divided by sr.
    ss_fg = qy_fg - 2.0 * d_fg * sy_fg + n_fg * d_fg * d_fg + n_bg * mu_fg * mu_fg
    ss_bg = qy_bg - 2.0 * d_bg * sy_bg + n_bg * d_bg * d_bg + n_fg * mu_bg * mu_bg
    inv_fg = jax.lax.rsqrt(ss_fg / sr_fg + EPS)       # EUP rsqrt, no big divides
    inv_bg = jax.lax.rsqrt(ss_bg / sr_bg + EPS)

    # ---- fold region select + style affine into per-(b,c,region) coefficients
    #   out = x * a_r + b_r  with  a_r = inv_r*std,  b_r = mean - mu_r*a_r
    std_s = std_ref[...]           # (bt, ct, 1) f32
    mean_s = mean_ref[...]
    a_fg = inv_fg * std_s
    a_bg = inv_bg * std_s
    b_fg = mean_s - mu_fg * a_fg
    b_bg = mean_s - mu_bg * a_bg

    a = a_bg + m * (a_fg - a_bg)   # binary lerp replaces the two-branch where
    b = b_bg + m * (b_fg - b_bg)
    o_ref[...] = (x * a + b).astype(o_ref.dtype)


def _choose_tiles(B, C, HW, target_bytes):
    """Pick (bt, ct): f32 x-block <= target_bytes, channel tile sublane-aligned
    (multiple of 8) or full C, and >=2 grid steps whenever the shape allows."""
    elt = 4  # in-kernel compute is f32
    if C % 8 == 0:
        ct_opts = sorted((d for d in range(8, C + 1, 8) if C % d == 0),
                         reverse=True)
    else:
        ct_opts = [C]  # full-dim block is always layout-legal
    ct = ct_opts[-1]
    for d in ct_opts:
        if d * HW * elt <= target_bytes:
            ct = d
            break
    bt = 1
    for d in sorted((d for d in range(1, B + 1) if B % d == 0), reverse=True):
        if d * ct * HW * elt <= target_bytes:
            bt = d
            break
    # >=2 grid steps: the BlockSpec pipeline only overlaps DMA with compute
    # across steps, and v7x megacore needs >=2 parallel steps for both TCs.
    while (B // bt) * (C // ct) < 2 and bt > 1:
        bt = max(d for d in range(1, bt) if B % d == 0)
    if (B // bt) * (C // ct) < 2:
        smaller = [d for d in ct_opts if d < ct]
        if smaller:
            ct = smaller[0]
    return bt, ct


def rn_l2_forward(x, mean_style, std_style, conv_w, threshold=THRESHOLD,
                  block_bytes=1 << 20, vmem_limit_bytes=32 << 20):
    """x: (B,C,H,W); mean_style/std_style: (B,C,1); conv_w: (1,2,7,7)."""
    B, C, H, W = x.shape
    HW = H * W
    cdt = jnp.float32

    # --- SelfAware_Affine2 + threshold mask, hoisted to the wrapper (exact) ---
    xf = x.astype(cdt)
    avg = jnp.mean(xf, axis=1, keepdims=True)
    mx = jnp.max(xf, axis=1, keepdims=True)
    z = jnp.concatenate([avg, mx], axis=1)                           # (B,2,H,W)
    conv = jax.lax.conv_general_dilated(
        z, conv_w.astype(cdt), window_strides=(1, 1),
        padding=((PAD, PAD), (PAD, PAD)),
        dimension_numbers=("NCHW", "OIHW", "NCHW"))                  # (B,1,H,W)
    sa = jax.nn.sigmoid(conv)
    # Mask travels in x's dtype (0/1 is exact in bf16/f16) to cut its HBM read.
    mask = (sa >= threshold).astype(x.dtype)

    # Lane-dense (B, C, H*W) views for the norm/affine/store path.
    x_flat = x.reshape(B, C, HW)
    m_flat = mask.reshape(B, 1, HW)
    ms = mean_style.reshape(B, C, 1).astype(cdt)
    ss = std_style.reshape(B, C, 1).astype(cdt)

    bt, ct = _choose_tiles(B, C, HW, block_bytes)
    grid = (B // bt, C // ct)

    kernel = functools.partial(_rn_l2_kernel, hw=HW)

    out_flat = pl.pallas_call(
        kernel,
        out_shape=jax.ShapeDtypeStruct((B, C, HW), x.dtype),
        grid_spec=pltpu.PrefetchScalarGridSpec(
            num_scalar_prefetch=0,
            grid=grid,
            in_specs=[
                pl.BlockSpec((bt, ct, HW), lambda b, c: (b, c, 0)),  # x
                pl.BlockSpec((bt, 1, HW), lambda b, c: (b, 0, 0)),   # mask
                pl.BlockSpec((bt, ct, 1), lambda b, c: (b, c, 0)),   # mean_style
                pl.BlockSpec((bt, ct, 1), lambda b, c: (b, c, 0)),   # std_style
            ],
            out_specs=pl.BlockSpec((bt, ct, HW), lambda b, c: (b, c, 0)),
        ),
        compiler_params=pltpu.CompilerParams(
            dimension_semantics=("parallel", "parallel"),
            vmem_limit_bytes=vmem_limit_bytes),
    )(x_flat, m_flat, ms, ss)

    # TODO(synk): visualize_feature_map(mask, 'mask') is a plotting side effect
    # with no Pallas equivalent; intentionally omitted.
    return out_flat.reshape(B, C, H, W)


# ----------------------------- pure-JAX reference -----------------------------
def rn_l2_reference(x, mean_style, std_style, conv_w, threshold=THRESHOLD):
    B, C, H, W = x.shape
    avg = jnp.mean(x, axis=1, keepdims=True)
    mx = jnp.max(x, axis=1, keepdims=True)
    z = jnp.concatenate([avg, mx], axis=1)                          # (B,2,H,W)
    conv = jax.lax.conv_general_dilated(
        z, conv_w, window_strides=(1, 1), padding=((PAD, PAD), (PAD, PAD)),
        dimension_numbers=("NCHW", "OIHW", "NCHW"))
    sa = jax.nn.sigmoid(conv)                                       # (B,1,H,W)
    mask = (sa >= threshold).astype(x.dtype)
    label = jnp.broadcast_to(mask, x.shape)

    def rn(region, m):
        s = jnp.sum(region, axis=(2, 3))
        sr = jnp.sum(m, axis=(2, 3))
        sr = jnp.where(sr == 0.0, 1.0, sr)
        mu = s / sr
        std = jnp.sqrt(
            jnp.sum((region - mu[:, :, None, None]) ** 2, axis=(2, 3)) / sr + EPS)
        return (region - mu[:, :, None, None]) / std[:, :, None, None] * m

    rn_x = rn(x * label, label) + rn(x * (1.0 - label), 1.0 - label)
    out = rn_x.reshape(B, C, -1) * std_style + mean_style
    return out.reshape(B, C, H, W)


if __name__ == "__main__":
    key = jax.random.PRNGKey(0)
    k1, k2, k3, k4 = jax.random.split(key, 4)

    B, C, H, W = 2, 4, 16, 16
    x = jax.random.normal(k1, (B, C, H, W), jnp.float32)
    mean_style = jax.random.normal(k2, (B, C, 1), jnp.float32)
    std_style = 1.0 + 0.5 * jax.random.normal(k3, (B, C, 1), jnp.float32)
    # Deterministic synthetic weight for nn.Conv2d(2, 1, 7, padding=3, bias=False)
    conv_w = jax.random.normal(k4, (1, 2, KSIZE, KSIZE), jnp.float32) * 0.3

    out = rn_l2_forward(x, mean_style, std_style, conv_w)
    jax.block_until_ready(out)

    ref = rn_l2_reference(x, mean_style, std_style, conv_w)
    assert out.shape == (B, C, H, W)
    assert jnp.allclose(out, ref, rtol=1e-4, atol=1e-4), (
        float(jnp.max(jnp.abs(out - ref))))

    print("KERNEL_OK")
</pallas_src>

<mosaic_0001>
module attributes {stable_mosaic.version = 11 : i64} {
  func.func @_rn_l2_kernel(%arg0: i32, %arg1: i32, %arg2: memref<1x4x256xf32, #tpu.memory_space<vmem>>, %arg3: memref<1x1x256xf32, #tpu.memory_space<vmem>>, %arg4: memref<1x4x1xf32, #tpu.memory_space<vmem>>, %arg5: memref<1x4x1xf32, #tpu.memory_space<vmem>>, %arg6: memref<1x4x256xf32, #tpu.memory_space<vmem>>) attributes {dimension_semantics = [#tpu.dimension_semantics<parallel>, #tpu.dimension_semantics<parallel>], iteration_bounds = array<i64: 2, 1>, scalar_prefetch = 0 : i64, scratch_operands = 0 : i64, tpu.core_type = #tpu.core_type<tc>, window_params = [{transform_indices = @transform_0, window_bounds = array<i64: 1, 4, 256>}, {transform_indices = @transform_1, window_bounds = array<i64: 1, 1, 256>}, {transform_indices = @transform_2, window_bounds = array<i64: 1, 4, 1>}, {transform_indices = @transform_3, window_bounds = array<i64: 1, 4, 1>}, {transform_indices = @transform_4, window_bounds = array<i64: 1, 4, 256>}]} {
    %c0 = arith.constant 0 : index
    %c0_0 = arith.constant 0 : index
    %c0_1 = arith.constant 0 : index
    %0 = vector.load %arg2[%c0, %c0_0, %c0_1] : memref<1x4x256xf32, #tpu.memory_space<vmem>>, vector<1x4x256xf32>
    %c0_2 = arith.constant 0 : index
    %c0_3 = arith.constant 0 : index
    %c0_4 = arith.constant 0 : index
    %1 = vector.load %arg3[%c0_2, %c0_3, %c0_4] : memref<1x1x256xf32, #tpu.memory_space<vmem>>, vector<1x1x256xf32>
    %cst = arith.constant dense<0.000000e+00> : vector<1x4xf32>
    %2 = vector.multi_reduction <add>, %0, %cst [2] : vector<1x4x256xf32> to vector<1x4xf32>
    %3 = vector.shape_cast %2 : vector<1x4xf32> to vector<1x4x1xf32>
    %cst_5 = arith.constant dense<0.000000e+00> : vector<1x1xf32>
    %4 = vector.multi_reduction <add>, %1, %cst_5 [2] : vector<1x1x256xf32> to vector<1x1xf32>
    %5 = vector.shape_cast %4 : vector<1x1xf32> to vector<1x1x1xf32>
    %cst_6 = arith.constant 3.906250e-03 : f32
    %6 = vector.broadcast %cst_6 : f32 to vector<1x4x1xf32>
    %7 = arith.mulf %3, %6 : vector<1x4x1xf32>
    %8 = vector.broadcast %7 : vector<1x4x1xf32> to vector<1x4x256xf32>
    %9 = arith.subf %0, %8 : vector<1x4x256xf32>
    %10 = vector.broadcast %1 : vector<1x1x256xf32> to vector<1x4x256xf32>
    %11 = arith.mulf %9, %10 : vector<1x4x256xf32>
    %cst_7 = arith.constant dense<0.000000e+00> : vector<1x4xf32>
    %12 = vector.multi_reduction <add>, %11, %cst_7 [2] : vector<1x4x256xf32> to vector<1x4xf32>
    %13 = vector.shape_cast %12 : vector<1x4xf32> to vector<1x4x1xf32>
    %14 = arith.mulf %11, %9 : vector<1x4x256xf32>
    %cst_8 = arith.constant dense<0.000000e+00> : vector<1x4xf32>
    %15 = vector.multi_reduction <add>, %14, %cst_8 [2] : vector<1x4x256xf32> to vector<1x4xf32>
    %16 = vector.shape_cast %15 : vector<1x4xf32> to vector<1x4x1xf32>
    %cst_9 = arith.constant dense<0.000000e+00> : vector<1x4xf32>
    %17 = vector.multi_reduction <add>, %9, %cst_9 [2] : vector<1x4x256xf32> to vector<1x4xf32>
    %18 = vector.shape_cast %17 : vector<1x4xf32> to vector<1x4x1xf32>
    %19 = arith.mulf %9, %9 : vector<1x4x256xf32>
    %cst_10 = arith.constant dense<0.000000e+00> : vector<1x4xf32>
    %20 = vector.multi_reduction <add>, %19, %cst_10 [2] : vector<1x4x256xf32> to vector<1x4xf32>
    %21 = vector.shape_cast %20 : vector<1x4xf32> to vector<1x4x1xf32>
    %22 = arith.subf %18, %13 : vector<1x4x1xf32>
    %23 = arith.subf %21, %16 : vector<1x4x1xf32>
    %cst_11 = arith.constant 2.560000e+02 : f32
    %24 = vector.broadcast %cst_11 : f32 to vector<1x1x1xf32>
    %25 = arith.subf %24, %5 : vector<1x1x1xf32>
    %cst_12 = arith.constant 0.000000e+00 : f32
    %26 = vector.broadcast %cst_12 : f32 to vector<1x1x1xf32>
    %27 = arith.cmpf oeq, %5, %26 : vector<1x1x1xf32>
    %cst_13 = arith.constant 1.000000e+00 : f32
    %28 = vector.broadcast %cst_13 : f32 to vector<1x1x1xf32>
    %29 = arith.select %27, %28, %5 : vector<1x1x1xi1>, vector<1x1x1xf32>
    %cst_14 = arith.constant 0.000000e+00 : f32
    %30 = vector.broadcast %cst_14 : f32 to vector<1x1x1xf32>
    %31 = arith.cmpf oeq, %25, %30 : vector<1x1x1xf32>
    %cst_15 = arith.constant 1.000000e+00 : f32
    %32 = vector.broadcast %cst_15 : f32 to vector<1x1x1xf32>
    %33 = arith.select %31, %32, %25 : vector<1x1x1xi1>, vector<1x1x1xf32>
    %34 = vector.broadcast %29 : vector<1x1x1xf32> to vector<1x4x1xf32>
    %35 = arith.divf %13, %34 : vector<1x4x1xf32>
    %36 = vector.broadcast %33 : vector<1x1x1xf32> to vector<1x4x1xf32>
    %37 = arith.divf %22, %36 : vector<1x4x1xf32>
    %38 = arith.addf %7, %35 : vector<1x4x1xf32>
    %39 = arith.addf %7, %37 : vector<1x4x1xf32>
    %cst_16 = arith.constant 2.000000e+00 : f32
    %40 = vector.broadcast %cst_16 : f32 to vector<1x4x1xf32>
    %41 = arith.mulf %40, %35 : vector<1x4x1xf32>
    %42 = arith.mulf %41, %13 : vector<1x4x1xf32>
    %43 = arith.subf %16, %42 : vector<1x4x1xf32>
    %44 = vector.broadcast %5 : vector<1x1x1xf32> to vector<1x4x1xf32>
    %45 = arith.mulf %44, %35 : vector<1x4x1xf32>
    %46 = arith.mulf %45, %35 : vector<1x4x1xf32>
    %47 = arith.addf %43, %46 : vector<1x4x1xf32>
    %48 = vector.broadcast %25 : vector<1x1x1xf32> to vector<1x4x1xf32>
    %49 = arith.mulf %48, %38 : vector<1x4x1xf32>
    %50 = arith.mulf %49, %38 : vector<1x4x1xf32>
    %51 = arith.addf %47, %50 : vector<1x4x1xf32>
    %cst_17 = arith.constant 2.000000e+00 : f32
    %52 = vector.broadcast %cst_17 : f32 to vector<1x4x1xf32>
    %53 = arith.mulf %52, %37 : vector<1x4x1xf32>
    %54 = arith.mulf %53, %22 : vector<1x4x1xf32>
    %55 = arith.subf %23, %54 : vector<1x4x1xf32>
    %56 = vector.broadcast %25 : vector<1x1x1xf32> to vector<1x4x1xf32>
    %57 = arith.mulf %56, %37 : vector<1x4x1xf32>
    %58 = arith.mulf %57, %37 : vector<1x4x1xf32>
    %59 = arith.addf %55, %58 : vector<1x4x1xf32>
    %60 = vector.broadcast %5 : vector<1x1x1xf32> to vector<1x4x1xf32>
    %61 = arith.mulf %60, %39 : vector<1x4x1xf32>
    %62 = arith.mulf %61, %39 : vector<1x4x1xf32>
    %63 = arith.addf %59, %62 : vector<1x4x1xf32>
    %64 = vector.broadcast %29 : vector<1x1x1xf32> to vector<1x4x1xf32>
    %65 = arith.divf %51, %64 : vector<1x4x1xf32>
    %cst_18 = arith.constant 9.99999974E-6 : f32
    %66 = vector.broadcast %cst_18 : f32 to vector<1x4x1xf32>
    %67 = arith.addf %65, %66 : vector<1x4x1xf32>
    %68 = math.rsqrt %67 : vector<1x4x1xf32>
    %69 = vector.broadcast %33 : vector<1x1x1xf32> to vector<1x4x1xf32>
    %70 = arith.divf %63, %69 : vector<1x4x1xf32>
    %cst_19 = arith.constant 9.99999974E-6 : f32
    %71 = vector.broadcast %cst_19 : f32 to vector<1x4x1xf32>
    %72 = arith.addf %70, %71 : vector<1x4x1xf32>
    %73 = math.rsqrt %72 : vector<1x4x1xf32>
    %c0_20 = arith.constant 0 : index
    %c0_21 = arith.constant 0 : index
    %c0_22 = arith.constant 0 : index
    %74 = vector.load %arg5[%c0_20, %c0_21, %c0_22] : memref<1x4x1xf32, #tpu.memory_space<vmem>>, vector<1x4x1xf32>
    %c0_23 = arith.constant 0 : index
    %c0_24 = arith.constant 0 : index
    %c0_25 = arith.constant 0 : index
    %75 = vector.load %arg4[%c0_23, %c0_24, %c0_25] : memref<1x4x1xf32, #tpu.memory_space<vmem>>, vector<1x4x1xf32>
    %76 = arith.mulf %68, %74 : vector<1x4x1xf32>
    %77 = arith.mulf %73, %74 : vector<1x4x1xf32>
    %78 = arith.mulf %38, %76 : vector<1x4x1xf32>
    %79 = arith.subf %75, %78 : vector<1x4x1xf32>
    %80 = arith.mulf %39, %77 : vector<1x4x1xf32>
    %81 = arith.subf %75, %80 : vector<1x4x1xf32>
    %82 = arith.subf %76, %77 : vector<1x4x1xf32>
    %83 = vector.broadcast %1 : vector<1x1x256xf32> to vector<1x4x256xf32>
    %84 = vector.broadcast %82 : vector<1x4x1xf32> to vector<1x4x256xf32>
    %85 = arith.mulf %83, %84 : vector<1x4x256xf32>
    %86 = vector.broadcast %77 : vector<1x4x1xf32> to vector<1x4x256xf32>
    %87 = arith.addf %86, %85 : vector<1x4x256xf32>
    %88 = arith.subf %79, %81 : vector<1x4x1xf32>
    %89 = vector.broadcast %1 : vector<1x1x256xf32> to vector<1x4x256xf32>
    %90 = vector.broadcast %88 : vector<1x4x1xf32> to vector<1x4x256xf32>
    %91 = arith.mulf %89, %90 : vector<1x4x256xf32>
    %92 = vector.broadcast %81 : vector<1x4x1xf32> to vector<1x4x256xf32>
    %93 = arith.addf %92, %91 : vector<1x4x256xf32>
    %94 = arith.mulf %0, %87 : vector<1x4x256xf32>
    %95 = arith.addf %94, %93 : vector<1x4x256xf32>
    %c0_26 = arith.constant 0 : index
    %c0_27 = arith.constant 0 : index
    %c0_28 = arith.constant 0 : index
    %96 = vector.load %arg6[%c0_26, %c0_27, %c0_28] : memref<1x4x256xf32, #tpu.memory_space<vmem>>, vector<1x4x256xf32>
    tpu.vector_store %arg6[%c0_26, %c0_27, %c0_28], %95 {strides = array<i32>} : memref<1x4x256xf32, #tpu.memory_space<vmem>>, vector<1x4x256xf32>,
    return
  }
  func.func @transform_0(%arg0: i32, %arg1: i32) -> (i32, i32, i32) {
    %c0_i32 = arith.constant 0 : i32
    %c0_i32_0 = arith.constant 0 : i32
    return %arg0, %arg1, %c0_i32 : i32, i32, i32
  }
  func.func @transform_1(%arg0: i32, %arg1: i32) -> (i32, i32, i32) {
    %c0_i32 = arith.constant 0 : i32
    %c0_i32_0 = arith.constant 0 : i32
    %c0_i32_1 = arith.constant 0 : i32
    return %arg0, %c0_i32, %c0_i32_0 : i32, i32, i32
  }
  func.func @transform_2(%arg0: i32, %arg1: i32) -> (i32, i32, i32) {
    %c0_i32 = arith.constant 0 : i32
    %c0_i32_0 = arith.constant 0 : i32
    return %arg0, %arg1, %c0_i32 : i32, i32, i32
  }
  func.func @transform_3(%arg0: i32, %arg1: i32) -> (i32, i32, i32) {
    %c0_i32 = arith.constant 0 : i32
    %c0_i32_0 = arith.constant 0 : i32
    return %arg0, %arg1, %c0_i32 : i32, i32, i32
  }
  func.func @transform_4(%arg0: i32, %arg1: i32) -> (i32, i32, i32) {
    %c0_i32 = arith.constant 0 : i32
    %c0_i32_0 = arith.constant 0 : i32
    return %arg0, %arg1, %c0_i32 : i32, i32, i32
  }
}

</mosaic_0001>

<llo_original>
// kernel: tpu_custom_call.1
$region0: #{tpu_custom_call.1}
  #allocation0 [shape = 'u32[]', space=smem, size = 0x4, offset = 0x4, fixed_abs, tag = 'smem constant byte address 0x4 - core index']
  #allocation1 [shape = 'u32[144,128]{1,0:T(1,128)}', space=vmem, size = 0x12000, scoped, tag = 'internal scratch']
  %s0 = inlined_call_operand.vmem [shape: f32[2,4,256], index: 0, kind: input, shape index: {}]
  %s1 = inlined_call_operand.vmem [shape: f32[2,1,256], index: 1, kind: input, shape index: {}]
  %s2 = inlined_call_operand.vmem [shape: f32[2,4,1], index: 2, kind: input, shape index: {}]
  %s3 = inlined_call_operand.vmem [shape: f32[2,4,1], index: 3, kind: input, shape index: {}]
  %s4 = inlined_call_operand.hbm [shape: f32[2,4,256], index: 4, kind: output, shape index: {}]
  %s5 = sld [smem:[#allocation0]]
  $region49: #{tpu_custom_call.1} parent=0
    _
  %s7 = ssub.s32 1, %s5
  %s8 = scalar_select 0, %s7, %s5
  $region1: #{tpu_custom_call.1} parent=0
    #allocation2 [shape = 'u8[8192]{0}', space=vmem, size = 0x2000, scoped, tag = 'output window, operand 0']
    #allocation3 [shape = 's32[2]{0}', space=sflag, size = 0x8, scoped, tag = 'scoped memory for tpu_custom_call.1']
    %9 = vsyncpa [#allocation3], 0
    %s10 = scalar_lea.sflag [#allocation3], 1
    %11 = vsyncpa %s10, 0
    loop: start=0, step=1, limit=4
    $region2: #{tpu_custom_call.1} parent=1 // loop_pre_header
      _
    $region3: #{tpu_custom_call.1} parent=1 // loop_header
      %s13 = sphi 0, %s17
      %p14 = scmp.ge.s32.totalorder %s13, 4
      %s20 = sphi 0, %s32
      %s21 = sphi 0, %s28
      %s22 = sphi 0, %s20
      %s23 = sphi 0, %s21
      %s24 = sphi 0, %s22
      %s25 = sphi 0, %s23
      %s37 = sphi 0, %s39
      %s40 = sphi 0, %s37
      %s41 = sphi 0, %s40
      %s57 = sphi 0, %s41
      %s63 = sphi 0, %s65
      %s66 = sphi 0, %s63
      %s67 = sphi 0, %s66
      %s83 = sphi 0, %s67
      %s91 = sphi 0, %s93
      %s94 = sphi 0, %s91
      %s95 = sphi 0, %s94
      %s111 = sphi 0, %s95
      %s119 = sphi 0, %s121
      %s122 = sphi 0, %s119
      %s123 = sphi 0, %s122
      %s139 = sphi 0, %s123
      %s147 = sphi 0, %s149
      %s150 = sphi 0, %s147
      %s151 = sphi 0, %s150
      %s167 = sphi 0, %s151
    $region4: #{tpu_custom_call.1} parent=1 // loop_header_branch
      %16 = sbr.rel (%p14) target = $region8
    $region5: #{tpu_custom_call.1} parent=1 // loop_body
      %s18 = ssub.s32 %s13, 1
      %s19 = ssub.s32 %s13, 2
      %s26 = sadd.s32 1, %s21
      %p27 = scmp.ge.s32.totalorder %s26, 1
      %s28 = scalar_select %p27, 0, %s26
      %s29 = sadd.s32 1, %s20
      %s30 = scalar_select %p27, %s29, %s20
      %p31 = scmp.ge.s32.totalorder %s30, 2
      %s32 = scalar_select %p31, 0, %s30
      %s33 = ssub.s32 %s20, %s32
      %s34 = ssub.s32 %s21, %s28
      %s35 = sor.u32 %s33, %s34
      %p36 = scmp.eq.s32.totalorder %s35, 0
      %s38 = sadd.s32 %s37, 1
      %s39 = scalar_select %p36, %s37, %s38
      %p42 = pneg %p36
      %p43 = scmp.eq.s32.totalorder %s13, 1
      %p44 = por %p42, %p43
      %p45 = scmp.ne.s32.totalorder %s37, %s40
      %p46 = scmp.eq.s32.totalorder %s13, 0
      %p47 = por %p45, %p46
      %p48 = scmp.ne.s32.totalorder %s37, %s40
      %p49 = scmp.eq.s32.totalorder %s18, 1
      %p50 = por %p48, %p49
      %p51 = scmp.ne.s32.totalorder %s40, %s41
      %p52 = scmp.eq.s32.totalorder %s18, 0
      %p53 = por %p51, %p52
      %p54 = scmp.ne.s32.totalorder %s40, %s41
      %p55 = scmp.eq.s32.totalorder %s19, 1
      %p56 = por %p54, %p55
      %p58 = scmp.ne.s32.totalorder %s41, %s57
      %p59 = scmp.eq.s32.totalorder %s19, 0
      %p60 = por %p58, %p59
      %s61 = ssub.s32 %s20, %s32
      %p62 = scmp.eq.s32.totalorder %s61, 0
      %s64 = sadd.s32 %s63, 1
      %s65 = scalar_select %p62, %s63, %s64
      %p68 = pneg %p62
      %p69 = scmp.eq.s32.totalorder %s13, 1
      %p70 = por %p68, %p69
      %p71 = scmp.ne.s32.totalorder %s63, %s66
      %p72 = scmp.eq.s32.totalorder %s13, 0
      %p73 = por %p71, %p72
      %p74 = scmp.ne.s32.totalorder %s63, %s66
      %p75 = scmp.eq.s32.totalorder %s18, 1
      %p76 = por %p74, %p75
      %p77 = scmp.ne.s32.totalorder %s66, %s67
      %p78 = scmp.eq.s32.totalorder %s18, 0
      %p79 = por %p77, %p78
      %p80 = scmp.ne.s32.totalorder %s66, %s67
      %p81 = scmp.eq.s32.totalorder %s19, 1
      %p82 = por %p80, %p81
      %p84 = scmp.ne.s32.totalorder %s67, %s83
      %p85 = scmp.eq.s32.totalorder %s19, 0
      %p86 = por %p84, %p85
      %s87 = ssub.s32 %s20, %s32
      %s88 = ssub.s32 %s21, %s28
      %s89 = sor.u32 %s87, %s88
      %p90 = scmp.eq.s32.totalorder %s89, 0
      %s92 = sadd.s32 %s91, 1
      %s93 = scalar_select %p90, %s91, %s92
      %p96 = pneg %p90
      %p97 = scmp.eq.s32.totalorder %s13, 1
      %p98 = por %p96, %p97
      %p99 = scmp.ne.s32.totalorder %s91, %s94
      %p100 = scmp.eq.s32.totalorder %s13, 0
      %p101 = por %p99, %p100
      %p102 = scmp.ne.s32.totalorder %s91, %s94
      %p103 = scmp.eq.s32.totalorder %s18, 1
      %p104 = por %p102, %p103
      %p105 = scmp.ne.s32.totalorder %s94, %s95
      %p106 = scmp.eq.s32.totalorder %s18, 0
      %p107 = por %p105, %p106
      %p108 = scmp.ne.s32.totalorder %s94, %s95
      %p109 = scmp.eq.s32.totalorder %s19, 1
      %p110 = por %p108, %p109
      %p112 = scmp.ne.s32.totalorder %s95, %s111
      %p113 = scmp.eq.s32.totalorder %s19, 0
      %p114 = por %p112, %p113
      %s115 = ssub.s32 %s20, %s32
      %s116 = ssub.s32 %s21, %s28
      %s117 = sor.u32 %s115, %s116
      %p118 = scmp.eq.s32.totalorder %s117, 0
      %s120 = sadd.s32 %s119, 1
      %s121 = scalar_select %p118, %s119, %s120
      %p124 = pneg %p118
      %p125 = scmp.eq.s32.totalorder %s13, 1
      %p126 = por %p124, %p125
      %p127 = scmp.ne.s32.totalorder %s119, %s122
      %p128 = scmp.eq.s32.totalorder %s13, 0
      %p129 = por %p127, %p128
      %p130 = scmp.ne.s32.totalorder %s119, %s122
      %p131 = scmp.eq.s32.totalorder %s18, 1
      %p132 = por %p130, %p131
      %p133 = scmp.ne.s32.totalorder %s122, %s123
      %p134 = scmp.eq.s32.totalorder %s18, 0
      %p135 = por %p133, %p134
      %p136 = scmp.ne.s32.totalorder %s122, %s123
      %p137 = scmp.eq.s32.totalorder %s19, 1
      %p138 = por %p136, %p137
      %p140 = scmp.ne.s32.totalorder %s123, %s139
      %p141 = scmp.eq.s32.totalorder %s19, 0
      %p142 = por %p140, %p141
      %s143 = ssub.s32 %s20, %s32
      %s144 = ssub.s32 %s21, %s28
      %s145 = sor.u32 %s143, %s144
      %p146 = scmp.eq.s32.totalorder %s145, 0
      %s148 = sadd.s32 %s147, 1
      %s149 = scalar_select %p146, %s147, %s148
      %p152 = pneg %p146
      %p153 = scmp.eq.s32.totalorder %s13, 1
      %p154 = por %p152, %p153
      %p155 = scmp.ne.s32.totalorder %s147, %s150
      %p156 = scmp.eq.s32.totalorder %s13, 0
      %p157 = por %p155, %p156
      %p158 = scmp.ne.s32.totalorder %s147, %s150
      %p159 = scmp.eq.s32.totalorder %s18, 1
      %p160 = por %p158, %p159
      %p161 = scmp.ne.s32.totalorder %s150, %s151
      %p162 = scmp.eq.s32.totalorder %s18, 0
      %p163 = por %p161, %p162
      %p164 = scmp.ne.s32.totalorder %s150, %s151
      %p165 = scmp.eq.s32.totalorder %s19, 1
      %p166 = por %p164, %p165
      %p168 = scmp.ne.s32.totalorder %s151, %s167
      %p169 = scmp.eq.s32.totalorder %s19, 0
      %p170 = por %p168, %p169
      %p171 = scmp.le.s32.totalorder 1, %s13
      %p172 = scmp.lt.s32.totalorder %s13, 3
      %p173 = pnand %p171, %p172
      %p174 = pneg %p173
      // Predicated region
      $region9: #{tpu_custom_call.1} parent=5 // pred_check
        _
      $region10: #{tpu_custom_call.1} parent=5 // pred_check_branch
        %176 = sbr.rel (%p173) target = $region12
      $region11: #{tpu_custom_call.1} parent=5 // pred_region
        %s177 = ssub.s32 %s13, 1
      $region12: #{tpu_custom_call.1} parent=5 // pred_fallthru
        _
      %p178 = scmp.lt.s32.totalorder %s13, 2
      // Predicated region
      $region13: #{tpu_custom_call.1} parent=5 // pred_check
        %p179 = pneg %p178
      $region14: #{tpu_custom_call.1} parent=5 // pred_check_branch
        %181 = sbr.rel (%p179) target = $region16
      $region15: #{tpu_custom_call.1} parent=5 // pred_region
        // Predicated region
        $region17: #{tpu_custom_call.1} parent=15 // pred_check
          %p182 = pneg %p47
        $region18: #{tpu_custom_call.1} parent=15 // pred_check_branch
          %184 = sbr.rel (%p182) target = $region20
        $region19: #{tpu_custom_call.1} parent=15 // pred_region
          %p185 = scmp.lt.s32.totalorder %s20, 1
          %s186 = scalar_select %p185, %s20, 1
          %p187 = scmp.lt.s32.totalorder %s21, 0
          %s188 = scalar_select %p187, %s21, 0
          %s189 = smul.addr %s188, 2
          %s190 = smul.addr %s186, 2
          %s191 = sadd.s32 %s189, %s190
          %s192 = smul.addr %s191, 4
          %s193 = scalar_lea.vmem %s0, %s192
        $region20: #{tpu_custom_call.1} parent=15 // pred_fallthru
          _
        // Predicated region
        $region21: #{tpu_custom_call.1} parent=15 // pred_check
          %p194 = pneg %p73
        $region22: #{tpu_custom_call.1} parent=15 // pred_check_branch
          %196 = sbr.rel (%p194) target = $region24
        $region23: #{tpu_custom_call.1} parent=15 // pred_region
          %p197 = scmp.lt.s32.totalorder %s20, 1
          %s198 = scalar_select %p197, %s20, 1
          %s199 = smul.addr %s198, 2
          %s200 = scalar_lea.vmem %s1, %s199
        $region24: #{tpu_custom_call.1} parent=15 // pred_fallthru
          _
        // Predicated region
        $region25: #{tpu_custom_call.1} parent=15 // pred_check
          %p201 = pneg %p101
        $region26: #{tpu_custom_call.1} parent=15 // pred_check_branch
          %203 = sbr.rel (%p201) target = $region28
        $region27: #{tpu_custom_call.1} parent=15 // pred_region
          %p204 = scmp.lt.s32.totalorder %s20, 1
          %s205 = scalar_select %p204, %s20, 1
          %p206 = scmp.lt.s32.totalorder %s21, 0
          %s207 = scalar_select %p206, %s21, 0
          %s208 = sadd.s32 %s207, %s205
          %s209 = smul.addr %s208, 4
          %s210 = scalar_lea.vmem %s2, %s209
        $region28: #{tpu_custom_call.1} parent=15 // pred_fallthru
          _
        // Predicated region
        $region29: #{tpu_custom_call.1} parent=15 // pred_check
          %p211 = pneg %p129
        $region30: #{tpu_custom_call.1} parent=15 // pred_check_branch
          %213 = sbr.rel (%p211) target = $region32
        $region31: #{tpu_custom_call.1} parent=15 // pred_region
          %p214 = scmp.lt.s32.totalorder %s20, 1
          %s215 = scalar_select %p214, %s20, 1
          %p216 = scmp.lt.s32.totalorder %s21, 0
          %s217 = scalar_select %p216, %s21, 0
          %s218 = sadd.s32 %s217, %s215
          %s219 = smul.addr %s218, 4
          %s220 = scalar_lea.vmem %s3, %s219
        $region32: #{tpu_custom_call.1} parent=15 // pred_fallthru
          _
      $region16: #{tpu_custom_call.1} parent=5 // pred_fallthru
        _
      %p221 = scmp.le.s32.totalorder 1, %s13
      %p222 = scmp.lt.s32.totalorder %s13, 3
      %p223 = pnand %p221, %p222
      %p224 = pneg %p223
      // Predicated region
      $region33: #{tpu_custom_call.1} parent=5 // pred_check
        _
      $region34: #{tpu_custom_call.1} parent=5 // pred_check_branch
        %226 = sbr.rel (%p223) target = $region36
      $region35: #{tpu_custom_call.1} parent=5 // pred_region
        %s227 = ssub.s32 %s13, 1
        %p228 = scmp.lt.s32.totalorder %s22, 1
        %s229 = scalar_select %p228, %s22, 1
        %p230 = scmp.lt.s32.totalorder %s23, 0
        %s231 = scalar_select %p230, %s23, 0
        %s232 = smul.addr %s231, 2
        %s233 = smul.addr %s229, 2
        %s234 = sadd.s32 %s232, %s233
        %s235 = smul.addr %s234, 4
        %s236 = scalar_lea.vmem %s0, %s235
        %p237 = pneg %p53
        %p238 = pneg %p50
        %p239 = scmp.lt.s32.totalorder %s22, 1
        %s240 = scalar_select %p239, %s22, 1
        %s241 = smul.addr %s240, 2
        %s242 = scalar_lea.vmem %s1, %s241
        %p243 = pneg %p79
        %p244 = pneg %p76
        %p245 = scmp.lt.s32.totalorder %s22, 1
        %s246 = scalar_select %p245, %s22, 1
        %p247 = scmp.lt.s32.totalorder %s23, 0
        %s248 = scalar_select %p247, %s23, 0
        %s249 = sadd.s32 %s248, %s246
        %s250 = smul.addr %s249, 4
        %s251 = scalar_lea.vmem %s2, %s250
        %p252 = pneg %p107
        %p253 = pneg %p104
        %p254 = scmp.lt.s32.totalorder %s22, 1
        %s255 = scalar_select %p254, %s22, 1
        %p256 = scmp.lt.s32.totalorder %s23, 0
        %s257 = scalar_select %p256, %s23, 0
        %s258 = sadd.s32 %s257, %s255
        %s259 = smul.addr %s258, 4
        %s260 = scalar_lea.vmem %s3, %s259
        %p261 = pneg %p135
        %p262 = pneg %p132
        %p263 = pneg %p163
        %p264 = pneg %p160
        %s265 = sand.u32 %s150, 1
        %s266 = scalar_lea.sflag [#allocation3], %s265
        %s267 = sand.u32 %s150, 1
        %s268 = smul.addr %s267, 8
        %s269 = scalar_lea.vmem [#allocation2], %s268
        %p270 = scmp.lt.s32.totalorder %s22, 1
        %s271 = scalar_select %p270, %s22, 1
        %p272 = scmp.lt.s32.totalorder %s23, 0
        %s273 = scalar_select %p272, %s23, 0
        %s274 = smul.addr %s273, 2
        %s275 = smul.addr %s271, 2
        %s276 = sadd.s32 %s274, %s275
        %s277 = smul.addr %s276, 4
        %s278 = scalar_lea.vmem %s0, %s277
        %p279 = scmp.lt.s32.totalorder %s22, 1
        %s280 = scalar_select %p279, %s22, 1
        %s281 = smul.addr %s280, 2
        %s282 = scalar_lea.vmem %s1, %s281
        %p283 = scmp.lt.s32.totalorder %s22, 1
        %s284 = scalar_select %p283, %s22, 1
        %p285 = scmp.lt.s32.totalorder %s23, 0
        %s286 = scalar_select %p285, %s23, 0
        %s287 = sadd.s32 %s286, %s284
        %s288 = smul.addr %s287, 4
        %s289 = scalar_lea.vmem %s2, %s288
        %p290 = scmp.lt.s32.totalorder %s22, 1
        %s291 = scalar_select %p290, %s22, 1
        %p292 = scmp.lt.s32.totalorder %s23, 0
        %s293 = scalar_select %p292, %s23, 0
        %s294 = sadd.s32 %s293, %s291
        %s295 = smul.addr %s294, 4
        %s296 = scalar_lea.vmem %s3, %s295
        %v297 = vld [vmem:[%s278] sm:$0xff]
        %v298 = vld [vmem:[%s282] sm:$0x3]
        %v300 = vcombine.high %v297, %v297
        %vm302 = vcmask 1043456
        %v303 = vsel %vm302, %v297, 0.0
        %v304 = vsel %vm302, %v300, 0.0
        %v305 = vadd.f32 %v303, %v304
        %306 = vadd.xlane.f32.xlu0 %v305
        %v307 = vpop.xlane.xlu0 %306
        %v309 = vlaneseq
        %v310 = vshrl.u32 %v309, 7
        %v311 = vsub.s32 0, %v310
        %v312 = vrot.slane %v298, %v311
        %v313 = vlaneseq
        %v314 = vshrl.u32 %v313, 7
        %v315 = vsub.s32 1, %v314
        %v316 = vrot.slane %v298, %v315
        %vm319 = vcmask 1040384
        %v320 = vsel %vm319, %v312, 0.0
        %v321 = vsel %vm319, %v316, 0.0
        %v322 = vadd.f32 %v320, %v321
        %323 = vadd.xlane.f32.xlu0 %v322
        %v324 = vpop.xlane.xlu0 %323
        %v325 = vmul.f32 %v307, 0.00390625
        %v328 = vunpack.c.l.s4 839922192
        %v329 = vunpack.c.0.s8 %v328
        %v330 = vlaneseq
        %v331 = vshrl.u32 %v330, 7
        %v332 = vsub.s32 %v329, %v331
        %v333 = vrot.slane %v325, %v332
        %v335 = vsub.f32 %v297, %v333
        %v336 = vcombine.low %v312, %v316
        %v338 = vmul.f32 %v335, %v336
        %v340 = vcombine.high %v338, %v338
        %v342 = vsel %vm302, %v338, 0.0
        %v343 = vsel %vm302, %v340, 0.0
        %v344 = vadd.f32 %v342, %v343
        %345 = vadd.xlane.f32.xlu0 %v344
        %v346 = vpop.xlane.xlu0 %345
        %v347 = vmul.f32 %v338, %v335
        %v349 = vcombine.high %v347, %v347
        %v351 = vsel %vm302, %v347, 0.0
        %v352 = vsel %vm302, %v349, 0.0
        %v353 = vadd.f32 %v351, %v352
        %354 = vadd.xlane.f32.xlu0 %v353
        %v355 = vpop.xlane.xlu0 %354
        %v357 = vcombine.high %v335, %v335
        %v359 = vsel %vm302, %v335, 0.0
        %v360 = vsel %vm302, %v357, 0.0
        %v361 = vadd.f32 %v359, %v360
        %362 = vadd.xlane.f32.xlu0 %v361
        %v363 = vpop.xlane.xlu0 %362
        %v364 = vmul.f32 %v335, %v335
        %v366 = vcombine.high %v364, %v364
        %v368 = vsel %vm302, %v364, 0.0
        %v369 = vsel %vm302, %v366, 0.0
        %v370 = vadd.f32 %v368, %v369
        %371 = vadd.xlane.f32.xlu0 %v370
        %v372 = vpop.xlane.xlu0 %371
        %v373 = vsub.f32 %v363, %v346
        %v374 = vsub.f32 %v372, %v355
        %v375 = vsub.f32 256.0, %v324
        %vm376 = vcmp.eq.f32.partialorder %v324, 0.0
        %v377 = vsel %vm376, 1.0, %v324
        %vm378 = vcmp.eq.f32.partialorder %v375, 0.0
        %v379 = vsel %vm378, 1.0, %v375
        %v380 = vlaneseq
        %v381 = vshrl.u32 %v380, 7
        %v382 = vsub.s32 0, %v381
        %v383 = vrot.slane %v377, %v382
        %v384 = vrcp.pop %v383
        %v385 = vmul.f32 %v346, %v384
        %v386 = vlaneseq
        %v387 = vshrl.u32 %v386, 7
        %v388 = vsub.s32 0, %v387
        %v389 = vrot.slane %v379, %v388
        %v390 = vrcp.pop %v389
        %v391 = vmul.f32 %v373, %v390
        %v392 = vadd.f32 %v325, %v385
        %v393 = vadd.f32 %v325, %v391
        %v394 = vmul.f32 %v385, 2.0
        %v395 = vmul.f32 %v394, %v346
        %v396 = vsub.f32 %v355, %v395
        %v397 = vlaneseq
        %v398 = vshrl.u32 %v397, 7
        %v399 = vsub.s32 0, %v398
        %v400 = vrot.slane %v324, %v399
        %v401 = vmul.f32 %v400, %v385
        %v402 = vmul.f32 %v401, %v385
        %v403 = vadd.f32 %v396, %v402
        %v404 = vlaneseq
        %v405 = vshrl.u32 %v404, 7
        %v406 = vsub.s32 0, %v405
        %v407 = vrot.slane %v375, %v406
        %v408 = vmul.f32 %v407, %v392
        %v409 = vmul.f32 %v408, %v392
        %v410 = vadd.f32 %v403, %v409
        %v411 = vmul.f32 %v391, 2.0
        %v412 = vmul.f32 %v411, %v373
        %v413 = vsub.f32 %v374, %v412
        %v414 = vmul.f32 %v407, %v391
        %v415 = vmul.f32 %v414, %v391
        %v416 = vadd.f32 %v413, %v415
        %v417 = vmul.f32 %v400, %v393
        %v418 = vmul.f32 %v417, %v393
        %v419 = vadd.f32 %v416, %v418
        %v420 = vmul.f32 %v410, %v384
        %v421 = vadd.f32 %v420, 1e-05
        %v422 = vrsqrt.pop %v421
        %v423 = vmul.f32 %v419, %v390
        %v424 = vadd.f32 %v423, 1e-05
        %v425 = vrsqrt.pop %v424
        %v426 = vld [vmem:[%s296] sm:$0xf]
        %v427 = vld [vmem:[%s289] sm:$0xf]
        %v428 = vmul.f32 %v422, %v426
        %v429 = vmul.f32 %v425, %v426
        %v430 = vmul.f32 %v392, %v428
        %v431 = vsub.f32 %v427, %v430
        %v432 = vmul.f32 %v393, %v429
        %v433 = vsub.f32 %v427, %v432
        %v434 = vsub.f32 %v428, %v429
        %436 = vset.pattern.permute.xlu0 0
        %437 = vperm.xlu0 %436, %v434
        %v438 = vpop.permute.xlu0 %437
        %v440 = vmul.f32 %v312, %v438
        %v441 = vmul.f32 %v316, %v438
        %443 = vset.pattern.permute.xlu0 0
        %444 = vperm.xlu0 %443, %v429
        %v445 = vpop.permute.xlu0 %444
        %v447 = vadd.f32 %v445, %v440
        %v448 = vadd.f32 %v445, %v441
        %v449 = vsub.f32 %v431, %v433
        %451 = vset.pattern.permute.xlu0 0
        %452 = vperm.xlu0 %451, %v449
        %v453 = vpop.permute.xlu0 %452
        %v455 = vmul.f32 %v312, %v453
        %v456 = vmul.f32 %v316, %v453
        %458 = vset.pattern.permute.xlu0 0
        %459 = vperm.xlu0 %458, %v433
        %v460 = vpop.permute.xlu0 %459
        %v462 = vadd.f32 %v460, %v455
        %v463 = vadd.f32 %v460, %v456
        %v466 = vcombine.low %v447, %v448
        %v468 = vmul.f32 %v297, %v466
        %v471 = vcombine.low %v462, %v463
        %v473 = vadd.f32 %v468, %v471
        %474 = vst [vmem:[%s269] sm:$0xff] %v473
        %s475 = sand.u32 %s150, 1
        %s476 = scalar_lea.sflag [#allocation3], %s475
        %s477 = sand.u32 %s150, 1
        %s478 = smul.addr %s477, 8
        %s479 = scalar_lea.vmem [#allocation2], %s478
        // Predicated region
        $region37: #{tpu_custom_call.1} parent=35 // pred_check
          %p480 = pneg %p160
        $region38: #{tpu_custom_call.1} parent=35 // pred_check_branch
          %482 = sbr.rel (%p480) target = $region40
        $region39: #{tpu_custom_call.1} parent=35 // pred_region
          %s484 = ssub.s32 128, 128
          %485 = vsyncadd %s476, %s484
          %s486 = smul.addr %s23, 2
          %s487 = smul.addr %s22, 2
          %s488 = sadd.s32 %s486, %s487
          %s489 = smul.addr %s488, 64
          %s490 = scalar_lea.hbm %s4, %s489
          %s492 = sshll.u32 %s479, 4
          %s493 = int_to_ptr.vmem [resolvable:$true] %s492
          %495 = dma.vmem_to_hbm [thread:$0]  %s493, 128, %s490, %s476
        $region40: #{tpu_custom_call.1} parent=35 // pred_fallthru
          _
      $region36: #{tpu_custom_call.1} parent=5 // pred_fallthru
        _
      %p496 = scmp.le.s32.totalorder 2, %s13
      // Predicated region
      $region41: #{tpu_custom_call.1} parent=5 // pred_check
        %p497 = pneg %p496
      $region42: #{tpu_custom_call.1} parent=5 // pred_check_branch
        %499 = sbr.rel (%p497) target = $region44
      $region43: #{tpu_custom_call.1} parent=5 // pred_region
        %s500 = ssub.s32 %s13, 2
        // Predicated region
        $region45: #{tpu_custom_call.1} parent=43 // pred_check
          %p501 = pneg %p166
        $region46: #{tpu_custom_call.1} parent=43 // pred_check_branch
          %503 = sbr.rel (%p501) target = $region48
        $region47: #{tpu_custom_call.1} parent=43 // pred_region
          %s504 = sand.u32 %s151, 1
          %s505 = scalar_lea.sflag [#allocation3], %s504
          %s506 = sand.u32 %s151, 1
          %s507 = smul.addr %s506, 8
          %s508 = scalar_lea.vmem [#allocation2], %s507
          %509 = dma.done %s505, 128
        $region48: #{tpu_custom_call.1} parent=43 // pred_fallthru
          _
      $region44: #{tpu_custom_call.1} parent=5 // pred_fallthru
        _
    $region6: #{tpu_custom_call.1} parent=1 // loop_footer
      %s17 = sadd.s32 1, %s13
    $region7: #{tpu_custom_call.1} parent=1 // loop_footer_branch
      %12 = sbr.rel target = $region3
    $region8: #{tpu_custom_call.1} parent=1 // loop_exit
      _
    %510 = vsyncpa [#allocation3], 1
    %s511 = scalar_lea.sflag [#allocation3], 1
    %512 = vsyncpa %s511, 1

</llo_original>
